<compile_context>
chip_gen: v7x
topology: tpu7x:2x2x1
jax: 0.10.0
libtpu: 0.0.40
codegen_flags: <defaults>
</compile_context>

<pallas_src>
import functools

import jax
import jax.numpy as jnp
from jax import lax
from jax.experimental import pallas as pl
from jax.experimental.pallas import tpu as pltpu

EPS = 1e-5
LANES = 128           # lane-dense padded feature width
MAX_BATCH_PAD = 4096  # keeps activations well under the v7x scoped-VMEM budget


def _qnet_kernel(x_ref, w_ref, vec_ref, out_ref, *, n_valid, n_pad, compute_dtype):
    """x_ref:   (n_pad, 128)   input, zero-padded in batch rows and feature lanes
       w_ref:   (4, 128, 128)  fc1..fc4 weights [in, out], zero-padded
       vec_ref: (16, 128)      rows 0-3: b1..b4, rows 4-6: gamma1..3, rows 8-10: beta1..3
       out_ref: (n_pad, 128)   lane-dense output; wrapper slices [:B, :action_size]"""
    x = x_ref[...]
    vec = vec_ref[...]

    if n_pad > n_valid:
        row_ids = lax.broadcasted_iota(jnp.int32, (n_pad, 1), 0)
        row_mask = row_ids < n_valid
    else:
        row_mask = None
    inv_n = jnp.float32(1.0 / n_valid)

    def linear(h, i):
        w = w_ref[i]  # (128, 128)
        acc = jnp.dot(h.astype(compute_dtype), w.astype(compute_dtype),
                      preferred_element_type=jnp.float32)
        return acc + vec[i]  # bias row i

    def bn_relu(h, i):
        # Single-pass batch moments; padded batch rows are masked out of the stats.
        hm = h if row_mask is None else jnp.where(row_mask, h, 0.0)
        s1 = jnp.sum(hm, axis=0, keepdims=True)
        s2 = jnp.sum(hm * hm, axis=0, keepdims=True)
        mu = s1 * inv_n
        var = jnp.maximum(s2 * inv_n - mu * mu, 0.0)    # biased batch variance
        scale = vec[4 + i] * lax.rsqrt(var + EPS)       # gamma * rsqrt(var+eps) (EUP)
        shift = vec[8 + i] - mu * scale                 # beta  - mu*scale
        return jnp.maximum(h * scale + shift, 0.0)      # fused normalize+affine, ReLU

    h = bn_relu(linear(x, 0), 0)
    h = bn_relu(linear(h, 1), 1)
    h = bn_relu(linear(h, 2), 2)
    out_ref[...] = linear(h, 3).astype(out_ref.dtype)


def pack_params(params):
    """Pack the 15 small parameter tensors into two lane-dense arrays (done once)."""
    state_size = params["w1"].shape[0]
    action_size = params["w4"].shape[1]
    w_stack = jnp.zeros((4, LANES, LANES), jnp.float32)
    vec = jnp.zeros((16, LANES), jnp.float32)
    for i in range(4):
        w = params[f"w{i + 1}"].astype(jnp.float32)
        b = params[f"b{i + 1}"].reshape(-1).astype(jnp.float32)
        w_stack = w_stack.at[i, : w.shape[0], : w.shape[1]].set(w)
        vec = vec.at[i, : b.shape[0]].set(b)
    for i in range(3):
        g = params[f"g{i + 1}"].reshape(-1).astype(jnp.float32)
        be = params[f"be{i + 1}"].reshape(-1).astype(jnp.float32)
        vec = vec.at[4 + i, : g.shape[0]].set(g)
        vec = vec.at[8 + i, : be.shape[0]].set(be)
    return w_stack, vec, state_size, action_size


def qnetwork_forward(x, packed, compute_dtype=jnp.float32):
    """x: [B, state_size] float32.  packed: output of pack_params()."""
    w_stack, vec, state_size, action_size = packed
    B, S = x.shape
    assert S == state_size
    B_pad = max(8, -(-B // 8) * 8)
    assert B_pad <= MAX_BATCH_PAD, (
        "batch too large for the single-invocation (full-batch BatchNorm) kernel")

    x_p = jnp.zeros((B_pad, LANES), jnp.float32).at[:B, :S].set(x.astype(jnp.float32))

    kernel = functools.partial(
        _qnet_kernel, n_valid=B, n_pad=B_pad, compute_dtype=compute_dtype)

    out_p = pl.pallas_call(
        kernel,
        out_shape=jax.ShapeDtypeStruct((B_pad, LANES), jnp.float32),
        in_specs=[pl.BlockSpec(memory_space=pltpu.VMEM)] * 3,
        out_specs=pl.BlockSpec(memory_space=pltpu.VMEM),
    )(x_p, w_stack, vec)
    return out_p[:B, :action_size]


def init_params(key, state_size, action_size, hidden_layers=(64, 64, 64)):
    """PyTorch-style init: U(-1/sqrt(fan_in), 1/sqrt(fan_in)) for Linear weight/bias;
    BatchNorm gamma=1, beta=0. Weights stored as [in, out]."""
    dims = [state_size, *hidden_layers, action_size]
    params = {}
    for i in range(4):
        fan_in, fan_out = dims[i], dims[i + 1]
        key, kw, kb = jax.random.split(key, 3)
        bound = 1.0 / (fan_in ** 0.5)
        params[f"w{i+1}"] = jax.random.uniform(
            kw, (fan_in, fan_out), jnp.float32, -bound, bound)
        params[f"b{i+1}"] = jax.random.uniform(
            kb, (1, fan_out), jnp.float32, -bound, bound)
        if i < 3:  # BatchNorm after fc1..fc3 only
            params[f"g{i+1}"] = jnp.ones((1, fan_out), jnp.float32)
            params[f"be{i+1}"] = jnp.zeros((1, fan_out), jnp.float32)
    return params


def _reference_forward(x, params):
    """Pure-JAX reference (training-mode BatchNorm) for sanity checking."""
    h = x
    for i in range(1, 4):
        h = h @ params[f"w{i}"] + params[f"b{i}"]
        mu = jnp.mean(h, axis=0, keepdims=True)
        var = jnp.mean((h - mu) ** 2, axis=0, keepdims=True)
        h = (h - mu) / jnp.sqrt(var + EPS)
        h = jnp.maximum(h * params[f"g{i}"] + params[f"be{i}"], 0.0)
    return h @ params["w4"] + params["b4"]


if __name__ == "__main__":
    state_size, action_size = 16, 4
    batch = 8

    key = jax.random.PRNGKey(0)
    key, kx = jax.random.split(key)
    x = jax.random.normal(kx, (batch, state_size), jnp.float32)
    params = init_params(key, state_size, action_size)
    packed = pack_params(params)

    # f32 path (exact module semantics)
    out = jax.block_until_ready(qnetwork_forward(x, packed))
    ref = _reference_forward(x, params)
    assert out.shape == (batch, action_size)
    assert jnp.allclose(out, ref, atol=1e-4, rtol=1e-3), "f32 mismatch vs reference"

    # ragged batch (exercises masked full-batch BatchNorm statistics)
    x6 = x[:6]
    out6 = jax.block_until_ready(qnetwork_forward(x6, packed))
    ref6 = _reference_forward(x6, params)
    assert out6.shape == (6, action_size)
    assert jnp.allclose(out6, ref6, atol=1e-4, rtol=1e-3), "ragged-batch mismatch"

    # bf16 matmul operands (f32 accumulate) — v6e/v7x MXU fast path, loose smoke check
    out_bf16 = jax.block_until_ready(
        qnetwork_forward(x, packed, compute_dtype=jnp.bfloat16))
    assert out_bf16.shape == (batch, action_size)
    assert bool(jnp.all(jnp.isfinite(out_bf16)))
    assert jnp.allclose(out_bf16, ref, atol=0.2, rtol=0.1), "bf16 smoke check"

    print("KERNEL_OK")
</pallas_src>

<mosaic_0001>
module attributes {stable_mosaic.version = 11 : i64} {
  func.func @_qnet_kernel(%arg0: memref<8x128xf32, #tpu.memory_space<vmem>>, %arg1: memref<4x128x128xf32, #tpu.memory_space<vmem>>, %arg2: memref<16x128xf32, #tpu.memory_space<vmem>>, %arg3: memref<8x128xf32, #tpu.memory_space<vmem>>) attributes {dimension_semantics = [], scalar_prefetch = 0 : i64, scratch_operands = 0 : i64, tpu.core_type = #tpu.core_type<tc>} {
    %c0 = arith.constant 0 : index
    %c0_0 = arith.constant 0 : index
    %0 = vector.load %arg0[%c0, %c0_0] : memref<8x128xf32, #tpu.memory_space<vmem>>, vector<8x128xf32>
    %c0_1 = arith.constant 0 : index
    %c0_2 = arith.constant 0 : index
    %1 = vector.load %arg2[%c0_1, %c0_2] : memref<16x128xf32, #tpu.memory_space<vmem>>, vector<16x128xf32>
    %c0_3 = arith.constant 0 : index
    %c0_4 = arith.constant 0 : index
    %c0_5 = arith.constant 0 : index
    %2 = vector.load %arg1[%c0_3, %c0_4, %c0_5] : memref<4x128x128xf32, #tpu.memory_space<vmem>>, vector<1x128x128xf32>
    %3 = vector.shape_cast %2 : vector<1x128x128xf32> to vector<128x128xf32>
    %cst = arith.constant dense<0.000000e+00> : vector<8x128xf32>
    %4 = tpu.matmul %0, %3, %cst {dimension_numbers = #tpu.dot_dimension_numbers<[1], [0], [0], [1], [0, 0, 1, 1], [], []>} : vector<8x128xf32>, vector<128x128xf32>, vector<8x128xf32> -> vector<8x128xf32>
    %5 = vector.extract_strided_slice %1 {offsets = [0, 0], sizes = [1, 128], strides = [1, 1]} : vector<16x128xf32> to vector<1x128xf32>
    %6 = vector.shape_cast %5 : vector<1x128xf32> to vector<128xf32>
    %7 = vector.shape_cast %6 : vector<128xf32> to vector<1x128xf32>
    %8 = vector.broadcast %7 : vector<1x128xf32> to vector<8x128xf32>
    %9 = arith.addf %4, %8 : vector<8x128xf32>
    %cst_6 = arith.constant dense<0.000000e+00> : vector<128xf32>
    %10 = vector.multi_reduction <add>, %9, %cst_6 [0] : vector<8x128xf32> to vector<128xf32>
    %11 = vector.shape_cast %10 : vector<128xf32> to vector<1x128xf32>
    %12 = arith.mulf %9, %9 : vector<8x128xf32>
    %cst_7 = arith.constant dense<0.000000e+00> : vector<128xf32>
    %13 = vector.multi_reduction <add>, %12, %cst_7 [0] : vector<8x128xf32> to vector<128xf32>
    %14 = vector.shape_cast %13 : vector<128xf32> to vector<1x128xf32>
    %cst_8 = arith.constant 1.250000e-01 : f32
    %15 = vector.broadcast %cst_8 : f32 to vector<1x128xf32>
    %16 = arith.mulf %11, %15 : vector<1x128xf32>
    %cst_9 = arith.constant 1.250000e-01 : f32
    %17 = vector.broadcast %cst_9 : f32 to vector<1x128xf32>
    %18 = arith.mulf %14, %17 : vector<1x128xf32>
    %19 = arith.mulf %16, %16 : vector<1x128xf32>
    %20 = arith.subf %18, %19 : vector<1x128xf32>
    %cst_10 = arith.constant 0.000000e+00 : f32
    %21 = vector.broadcast %cst_10 : f32 to vector<1x128xf32>
    %22 = arith.maximumf %20, %21 : vector<1x128xf32>
    %23 = vector.extract_strided_slice %1 {offsets = [4, 0], sizes = [1, 128], strides = [1, 1]} : vector<16x128xf32> to vector<1x128xf32>
    %24 = vector.shape_cast %23 : vector<1x128xf32> to vector<128xf32>
    %cst_11 = arith.constant 9.99999974E-6 : f32
    %25 = vector.broadcast %cst_11 : f32 to vector<1x128xf32>
    %26 = arith.addf %22, %25 : vector<1x128xf32>
    %27 = math.rsqrt %26 : vector<1x128xf32>
    %28 = vector.shape_cast %24 : vector<128xf32> to vector<1x128xf32>
    %29 = arith.mulf %28, %27 : vector<1x128xf32>
    %30 = vector.extract_strided_slice %1 {offsets = [8, 0], sizes = [1, 128], strides = [1, 1]} : vector<16x128xf32> to vector<1x128xf32>
    %31 = vector.shape_cast %30 : vector<1x128xf32> to vector<128xf32>
    %32 = arith.mulf %16, %29 : vector<1x128xf32>
    %33 = vector.shape_cast %31 : vector<128xf32> to vector<1x128xf32>
    %34 = arith.subf %33, %32 : vector<1x128xf32>
    %35 = vector.broadcast %29 : vector<1x128xf32> to vector<8x128xf32>
    %36 = arith.mulf %9, %35 : vector<8x128xf32>
    %37 = vector.broadcast %34 : vector<1x128xf32> to vector<8x128xf32>
    %38 = arith.addf %36, %37 : vector<8x128xf32>
    %cst_12 = arith.constant 0.000000e+00 : f32
    %39 = vector.broadcast %cst_12 : f32 to vector<8x128xf32>
    %40 = arith.maximumf %38, %39 : vector<8x128xf32>
    %c1 = arith.constant 1 : index
    %c0_13 = arith.constant 0 : index
    %c0_14 = arith.constant 0 : index
    %41 = vector.load %arg1[%c1, %c0_13, %c0_14] : memref<4x128x128xf32, #tpu.memory_space<vmem>>, vector<1x128x128xf32>
    %42 = vector.shape_cast %41 : vector<1x128x128xf32> to vector<128x128xf32>
    %cst_15 = arith.constant dense<0.000000e+00> : vector<8x128xf32>
    %43 = tpu.matmul %40, %42, %cst_15 {dimension_numbers = #tpu.dot_dimension_numbers<[1], [0], [0], [1], [0, 0, 1, 1], [], []>} : vector<8x128xf32>, vector<128x128xf32>, vector<8x128xf32> -> vector<8x128xf32>
    %44 = vector.extract_strided_slice %1 {offsets = [1, 0], sizes = [1, 128], strides = [1, 1]} : vector<16x128xf32> to vector<1x128xf32>
    %45 = vector.shape_cast %44 : vector<1x128xf32> to vector<128xf32>
    %46 = vector.shape_cast %45 : vector<128xf32> to vector<1x128xf32>
    %47 = vector.broadcast %46 : vector<1x128xf32> to vector<8x128xf32>
    %48 = arith.addf %43, %47 : vector<8x128xf32>
    %cst_16 = arith.constant dense<0.000000e+00> : vector<128xf32>
    %49 = vector.multi_reduction <add>, %48, %cst_16 [0] : vector<8x128xf32> to vector<128xf32>
    %50 = vector.shape_cast %49 : vector<128xf32> to vector<1x128xf32>
    %51 = arith.mulf %48, %48 : vector<8x128xf32>
    %cst_17 = arith.constant dense<0.000000e+00> : vector<128xf32>
    %52 = vector.multi_reduction <add>, %51, %cst_17 [0] : vector<8x128xf32> to vector<128xf32>
    %53 = vector.shape_cast %52 : vector<128xf32> to vector<1x128xf32>
    %cst_18 = arith.constant 1.250000e-01 : f32
    %54 = vector.broadcast %cst_18 : f32 to vector<1x128xf32>
    %55 = arith.mulf %50, %54 : vector<1x128xf32>
    %cst_19 = arith.constant 1.250000e-01 : f32
    %56 = vector.broadcast %cst_19 : f32 to vector<1x128xf32>
    %57 = arith.mulf %53, %56 : vector<1x128xf32>
    %58 = arith.mulf %55, %55 : vector<1x128xf32>
    %59 = arith.subf %57, %58 : vector<1x128xf32>
    %cst_20 = arith.constant 0.000000e+00 : f32
    %60 = vector.broadcast %cst_20 : f32 to vector<1x128xf32>
    %61 = arith.maximumf %59, %60 : vector<1x128xf32>
    %62 = vector.extract_strided_slice %1 {offsets = [5, 0], sizes = [1, 128], strides = [1, 1]} : vector<16x128xf32> to vector<1x128xf32>
    %63 = vector.shape_cast %62 : vector<1x128xf32> to vector<128xf32>
    %cst_21 = arith.constant 9.99999974E-6 : f32
    %64 = vector.broadcast %cst_21 : f32 to vector<1x128xf32>
    %65 = arith.addf %61, %64 : vector<1x128xf32>
    %66 = math.rsqrt %65 : vector<1x128xf32>
    %67 = vector.shape_cast %63 : vector<128xf32> to vector<1x128xf32>
    %68 = arith.mulf %67, %66 : vector<1x128xf32>
    %69 = vector.extract_strided_slice %1 {offsets = [9, 0], sizes = [1, 128], strides = [1, 1]} : vector<16x128xf32> to vector<1x128xf32>
    %70 = vector.shape_cast %69 : vector<1x128xf32> to vector<128xf32>
    %71 = arith.mulf %55, %68 : vector<1x128xf32>
    %72 = vector.shape_cast %70 : vector<128xf32> to vector<1x128xf32>
    %73 = arith.subf %72, %71 : vector<1x128xf32>
    %74 = vector.broadcast %68 : vector<1x128xf32> to vector<8x128xf32>
    %75 = arith.mulf %48, %74 : vector<8x128xf32>
    %76 = vector.broadcast %73 : vector<1x128xf32> to vector<8x128xf32>
    %77 = arith.addf %75, %76 : vector<8x128xf32>
    %cst_22 = arith.constant 0.000000e+00 : f32
    %78 = vector.broadcast %cst_22 : f32 to vector<8x128xf32>
    %79 = arith.maximumf %77, %78 : vector<8x128xf32>
    %c2 = arith.constant 2 : index
    %c0_23 = arith.constant 0 : index
    %c0_24 = arith.constant 0 : index
    %80 = vector.load %arg1[%c2, %c0_23, %c0_24] : memref<4x128x128xf32, #tpu.memory_space<vmem>>, vector<1x128x128xf32>
    %81 = vector.shape_cast %80 : vector<1x128x128xf32> to vector<128x128xf32>
    %cst_25 = arith.constant dense<0.000000e+00> : vector<8x128xf32>
    %82 = tpu.matmul %79, %81, %cst_25 {dimension_numbers = #tpu.dot_dimension_numbers<[1], [0], [0], [1], [0, 0, 1, 1], [], []>} : vector<8x128xf32>, vector<128x128xf32>, vector<8x128xf32> -> vector<8x128xf32>
    %83 = vector.extract_strided_slice %1 {offsets = [2, 0], sizes = [1, 128], strides = [1, 1]} : vector<16x128xf32> to vector<1x128xf32>
    %84 = vector.shape_cast %83 : vector<1x128xf32> to vector<128xf32>
    %85 = vector.shape_cast %84 : vector<128xf32> to vector<1x128xf32>
    %86 = vector.broadcast %85 : vector<1x128xf32> to vector<8x128xf32>
    %87 = arith.addf %82, %86 : vector<8x128xf32>
    %cst_26 = arith.constant dense<0.000000e+00> : vector<128xf32>
    %88 = vector.multi_reduction <add>, %87, %cst_26 [0] : vector<8x128xf32> to vector<128xf32>
    %89 = vector.shape_cast %88 : vector<128xf32> to vector<1x128xf32>
    %90 = arith.mulf %87, %87 : vector<8x128xf32>
    %cst_27 = arith.constant dense<0.000000e+00> : vector<128xf32>
    %91 = vector.multi_reduction <add>, %90, %cst_27 [0] : vector<8x128xf32> to vector<128xf32>
    %92 = vector.shape_cast %91 : vector<128xf32> to vector<1x128xf32>
    %cst_28 = arith.constant 1.250000e-01 : f32
    %93 = vector.broadcast %cst_28 : f32 to vector<1x128xf32>
    %94 = arith.mulf %89, %93 : vector<1x128xf32>
    %cst_29 = arith.constant 1.250000e-01 : f32
    %95 = vector.broadcast %cst_29 : f32 to vector<1x128xf32>
    %96 = arith.mulf %92, %95 : vector<1x128xf32>
    %97 = arith.mulf %94, %94 : vector<1x128xf32>
    %98 = arith.subf %96, %97 : vector<1x128xf32>
    %cst_30 = arith.constant 0.000000e+00 : f32
    %99 = vector.broadcast %cst_30 : f32 to vector<1x128xf32>
    %100 = arith.maximumf %98, %99 : vector<1x128xf32>
    %101 = vector.extract_strided_slice %1 {offsets = [6, 0], sizes = [1, 128], strides = [1, 1]} : vector<16x128xf32> to vector<1x128xf32>
    %102 = vector.shape_cast %101 : vector<1x128xf32> to vector<128xf32>
    %cst_31 = arith.constant 9.99999974E-6 : f32
    %103 = vector.broadcast %cst_31 : f32 to vector<1x128xf32>
    %104 = arith.addf %100, %103 : vector<1x128xf32>
    %105 = math.rsqrt %104 : vector<1x128xf32>
    %106 = vector.shape_cast %102 : vector<128xf32> to vector<1x128xf32>
    %107 = arith.mulf %106, %105 : vector<1x128xf32>
    %108 = vector.extract_strided_slice %1 {offsets = [10, 0], sizes = [1, 128], strides = [1, 1]} : vector<16x128xf32> to vector<1x128xf32>
    %109 = vector.shape_cast %108 : vector<1x128xf32> to vector<128xf32>
    %110 = arith.mulf %94, %107 : vector<1x128xf32>
    %111 = vector.shape_cast %109 : vector<128xf32> to vector<1x128xf32>
    %112 = arith.subf %111, %110 : vector<1x128xf32>
    %113 = vector.broadcast %107 : vector<1x128xf32> to vector<8x128xf32>
    %114 = arith.mulf %87, %113 : vector<8x128xf32>
    %115 = vector.broadcast %112 : vector<1x128xf32> to vector<8x128xf32>
    %116 = arith.addf %114, %115 : vector<8x128xf32>
    %cst_32 = arith.constant 0.000000e+00 : f32
    %117 = vector.broadcast %cst_32 : f32 to vector<8x128xf32>
    %118 = arith.maximumf %116, %117 : vector<8x128xf32>
    %c3 = arith.constant 3 : index
    %c0_33 = arith.constant 0 : index
    %c0_34 = arith.constant 0 : index
    %119 = vector.load %arg1[%c3, %c0_33, %c0_34] : memref<4x128x128xf32, #tpu.memory_space<vmem>>, vector<1x128x128xf32>
    %120 = vector.shape_cast %119 : vector<1x128x128xf32> to vector<128x128xf32>
    %cst_35 = arith.constant dense<0.000000e+00> : vector<8x128xf32>
    %121 = tpu.matmul %118, %120, %cst_35 {dimension_numbers = #tpu.dot_dimension_numbers<[1], [0], [0], [1], [0, 0, 1, 1], [], []>} : vector<8x128xf32>, vector<128x128xf32>, vector<8x128xf32> -> vector<8x128xf32>
    %122 = vector.extract_strided_slice %1 {offsets = [3, 0], sizes = [1, 128], strides = [1, 1]} : vector<16x128xf32> to vector<1x128xf32>
    %123 = vector.shape_cast %122 : vector<1x128xf32> to vector<128xf32>
    %124 = vector.shape_cast %123 : vector<128xf32> to vector<1x128xf32>
    %125 = vector.broadcast %124 : vector<1x128xf32> to vector<8x128xf32>
    %126 = arith.addf %121, %125 : vector<8x128xf32>
    %c0_36 = arith.constant 0 : index
    %c0_37 = arith.constant 0 : index
    %127 = vector.load %arg3[%c0_36, %c0_37] : memref<8x128xf32, #tpu.memory_space<vmem>>, vector<8x128xf32>
    tpu.vector_store %arg3[%c0_36, %c0_37], %126 {strides = array<i32>} : memref<8x128xf32, #tpu.memory_space<vmem>>, vector<8x128xf32>,
    return
  }
}

</mosaic_0001>

<llo_original>
// kernel: tpu_custom_call.1
$region0: #{tpu_custom_call.1}
  #allocation0 [shape = 'u32[]', space=smem, size = 0x4, offset = 0x4, fixed_abs, tag = 'smem constant byte address 0x4 - core index']
  #allocation1 [shape = 'u32[144,128]{1,0:T(1,128)}', space=vmem, size = 0x12000, scoped, tag = 'internal scratch']
  %s0 = inlined_call_operand.hbm [shape: f32[8,128], index: 0, kind: input, shape index: {}]
  %s1 = inlined_call_operand.hbm [shape: f32[4,128,128], index: 1, kind: input, shape index: {}]
  %s2 = inlined_call_operand.hbm [shape: f32[16,128], index: 2, kind: input, shape index: {}]
  %s3 = inlined_call_operand.hbm [shape: f32[8,128], index: 3, kind: output, shape index: {}]
  %s4 = sld [smem:[#allocation0]]
  $region34: #{tpu_custom_call.1} parent=0
    _
  %s6 = ssub.s32 1, %s4
  %s7 = scalar_select 0, %s6, %s4
  $region1: #{tpu_custom_call.1} parent=0
    #allocation2 [shape = 'u8[4096]{0}', space=vmem, size = 0x1000, scoped, tag = 'input window, operand 0, single buffered']
    #allocation3 [shape = 's32[1]{0}', space=sflag, size = 0x4, scoped, tag = 'scoped memory for tpu_custom_call.1']
    #allocation4 [shape = 's32[1]{0}', space=sflag, size = 0x4, scoped, tag = 'scoped memory for tpu_custom_call.1']
    #allocation5 [shape = 'u8[262144]{0}', space=vmem, size = 0x40000, scoped, tag = 'input window, operand 1, single buffered']
    #allocation6 [shape = 's32[1]{0}', space=sflag, size = 0x4, scoped, tag = 'scoped memory for tpu_custom_call.1']
    #allocation7 [shape = 'u8[8192]{0}', space=vmem, size = 0x2000, scoped, tag = 'input window, operand 2, single buffered']
    #allocation8 [shape = 'u8[4096]{0}', space=vmem, size = 0x1000, scoped, tag = 'output window, operand 0, single buffered']
    %8 = vsyncpa [#allocation3], 0
    %9 = vsyncpa [#allocation6], 0
    %10 = vsyncpa [#allocation4], 0
    // Predicated region
    $region2: #{tpu_custom_call.1} parent=1 // pred_check
      _
    $region3: #{tpu_custom_call.1} parent=1 // pred_check_branch
      %12 = sbr.rel (0) target = $region5
    $region4: #{tpu_custom_call.1} parent=1 // pred_region
      %s14 = ssub.s32 128, 128
      %15 = vsyncadd [#allocation3], %s14
      %s17 = sshll.u32 [#allocation2], 4
      %s18 = int_to_ptr.vmem [resolvable:$true] %s17
      %20 = dma.hbm_to_vmem [thread:$0]  %s0, 128, %s18, [#allocation3]
    $region5: #{tpu_custom_call.1} parent=1 // pred_fallthru
      _
    // Predicated region
    $region6: #{tpu_custom_call.1} parent=1 // pred_check
      _
    $region7: #{tpu_custom_call.1} parent=1 // pred_check_branch
      %22 = sbr.rel (0) target = $region9
    $region8: #{tpu_custom_call.1} parent=1 // pred_region
      %s24 = ssub.s32 8192, 8192
      %25 = vsyncadd [#allocation6], %s24
      %s26 = sshll.u32 [#allocation5], 4
      %s27 = int_to_ptr.vmem [resolvable:$true] %s26
      %32 = dma.hbm_to_vmem [thread:$0]  %s1, 8192, %s27, [#allocation6], 128, 128, 8
    $region9: #{tpu_custom_call.1} parent=1 // pred_fallthru
      _
    // Predicated region
    $region10: #{tpu_custom_call.1} parent=1 // pred_check
      _
    $region11: #{tpu_custom_call.1} parent=1 // pred_check_branch
      %34 = sbr.rel (0) target = $region13
    $region12: #{tpu_custom_call.1} parent=1 // pred_region
      %s36 = ssub.s32 256, 256
      %37 = vsyncadd [#allocation6], %s36
      %s38 = sshll.u32 [#allocation7], 4
      %s39 = int_to_ptr.vmem [resolvable:$true] %s38
      %44 = dma.hbm_to_vmem [thread:$0]  %s2, 256, %s39, [#allocation6], 128, 128, 8
    $region13: #{tpu_custom_call.1} parent=1 // pred_fallthru
      _
    // Predicated region
    $region14: #{tpu_custom_call.1} parent=1 // pred_check
      _
    $region15: #{tpu_custom_call.1} parent=1 // pred_check_branch
      %46 = sbr.rel (0) target = $region17
    $region16: #{tpu_custom_call.1} parent=1 // pred_region
      %47 = dma.done [#allocation3], 128
    $region17: #{tpu_custom_call.1} parent=1 // pred_fallthru
      _
    // Predicated region
    $region18: #{tpu_custom_call.1} parent=1 // pred_check
      _
    $region19: #{tpu_custom_call.1} parent=1 // pred_check_branch
      %49 = sbr.rel (0) target = $region21
    $region20: #{tpu_custom_call.1} parent=1 // pred_region
      %50 = dma.done [#allocation6], 8192
    $region21: #{tpu_custom_call.1} parent=1 // pred_fallthru
      _
    // Predicated region
    $region22: #{tpu_custom_call.1} parent=1 // pred_check
      _
    $region23: #{tpu_custom_call.1} parent=1 // pred_check_branch
      %52 = sbr.rel (0) target = $region25
    $region24: #{tpu_custom_call.1} parent=1 // pred_region
      %53 = dma.done [#allocation6], 256
    $region25: #{tpu_custom_call.1} parent=1 // pred_fallthru
      _
    %v54 = vld [vmem:[#allocation2] sm:$0xff]
    %v55 = vld [vmem:[#allocation7] sm:$0xff]
    %v56 = vld [vmem:[#allocation7 + $0x8] sm:$0xff]
    %v57 = vld [vmem:[#allocation5] sm:$0xff]
    %v58 = vld [vmem:[#allocation5 + $0x8] sm:$0xff]
    %v59 = vld [vmem:[#allocation5 + $0x10] sm:$0xff]
    %v60 = vld [vmem:[#allocation5 + $0x18] sm:$0xff]
    %v61 = vld [vmem:[#allocation5 + $0x20] sm:$0xff]
    %v62 = vld [vmem:[#allocation5 + $0x28] sm:$0xff]
    %v63 = vld [vmem:[#allocation5 + $0x30] sm:$0xff]
    %v64 = vld [vmem:[#allocation5 + $0x38] sm:$0xff]
    %v65 = vld [vmem:[#allocation5 + $0x40] sm:$0xff]
    %v66 = vld [vmem:[#allocation5 + $0x48] sm:$0xff]
    %v67 = vld [vmem:[#allocation5 + $0x50] sm:$0xff]
    %v68 = vld [vmem:[#allocation5 + $0x58] sm:$0xff]
    %v69 = vld [vmem:[#allocation5 + $0x60] sm:$0xff]
    %v70 = vld [vmem:[#allocation5 + $0x68] sm:$0xff]
    %v71 = vld [vmem:[#allocation5 + $0x70] sm:$0xff]
    %v72 = vld [vmem:[#allocation5 + $0x78] sm:$0xff]
    %v73 = vlaneseq
    %v74 = vshrl.u32 %v73, 7
    %v75 = vsub.s32 0, %v74
    %v76 = vrot.slane %v55, %v75
    %77 = vmatprep.subr.mxu0 0.0
    %78 = vmatpush1.msra.mxu0 %v57
    %79 = vmatprep.subr.mxu0 0.0
    %80 = vmatpush1.msra.mxu0 %v58
    %81 = vmatprep.subr.mxu0 0.0
    %82 = vmatpush1.msra.mxu0 %v59
    %83 = vmatprep.subr.mxu0 0.0
    %84 = vmatpush1.msra.mxu0 %v60
    %85 = vmatprep.subr.mxu0 0.0
    %86 = vmatpush1.msra.mxu0 %v61
    %87 = vmatprep.subr.mxu0 0.0
    %88 = vmatpush1.msra.mxu0 %v62
    %89 = vmatprep.subr.mxu0 0.0
    %90 = vmatpush1.msra.mxu0 %v63
    %91 = vmatprep.subr.mxu0 0.0
    %92 = vmatpush1.msra.mxu0 %v64
    %93 = vmatprep.subr.mxu0 0.0
    %94 = vmatpush1.msra.mxu0 %v65
    %95 = vmatprep.subr.mxu0 0.0
    %96 = vmatpush1.msra.mxu0 %v66
    %97 = vmatprep.subr.mxu0 0.0
    %98 = vmatpush1.msra.mxu0 %v67
    %99 = vmatprep.subr.mxu0 0.0
    %100 = vmatpush1.msra.mxu0 %v68
    %101 = vmatprep.subr.mxu0 0.0
    %102 = vmatpush1.msra.mxu0 %v69
    %103 = vmatprep.subr.mxu0 0.0
    %104 = vmatpush1.msra.mxu0 %v70
    %105 = vmatprep.subr.mxu0 0.0
    %106 = vmatpush1.msra.mxu0 %v71
    %107 = vmatprep.subr.mxu0 0.0
    %108 = vmatpush1.msra.mxu0 %v72
    %109 = vmatprep.subr.mxu0 0.0
    %110 = vmatpush1.msra.mxu0 0.0
    %111 = vmatprep.subr.mxu0 0.0
    %112 = vmatpush1.msra.mxu0 0.0
    %113 = vmatprep.subr.mxu0 0.0
    %114 = vmatpush1.msra.mxu0 0.0
    %115 = vmatprep.subr.mxu0 0.0
    %116 = vmatpush1.msra.mxu0 0.0
    %117 = vmatprep.subr.mxu0 0.0
    %118 = vmatpush1.msra.mxu0 0.0
    %119 = vmatprep.subr.mxu0 0.0
    %120 = vmatpush1.msra.mxu0 0.0
    %121 = vmatprep.subr.mxu0 0.0
    %122 = vmatpush1.msra.mxu0 0.0
    %123 = vmatprep.subr.mxu0 0.0
    %124 = vmatpush1.msra.mxu0 0.0
    %125 = vmatprep.subr.mxu0 0.0
    %126 = vmatpush1.msra.mxu0 0.0
    %127 = vmatprep.subr.mxu0 0.0
    %128 = vmatpush1.msra.mxu0 0.0
    %129 = vmatprep.subr.mxu0 0.0
    %130 = vmatpush1.msra.mxu0 0.0
    %131 = vmatprep.subr.mxu0 0.0
    %132 = vmatpush1.msra.mxu0 0.0
    %133 = vmatprep.subr.mxu0 0.0
    %134 = vmatpush1.msra.mxu0 0.0
    %135 = vmatprep.subr.mxu0 0.0
    %136 = vmatpush1.msra.mxu0 0.0
    %137 = vmatprep.subr.mxu0 0.0
    %138 = vmatpush1.msra.mxu0 0.0
    %139 = vmatprep.subr.mxu0 0.0
    %140 = vmatpush1.msra.mxu0 0.0
    %141 = vmatprep.mubr.f32.mxu0 0.0
    %142 = vmatmul.mubr.f32.gmra.mrb[0].mxu0 %v54
    %v143 = vpop.f32.mrb[0].mxu0
    %v144 = vadd.f32 %v76, %v143
    %v145 = vpop.f32.mrb[0].mxu0
    %146 = vdwg.mxu0
    %v147 = vrot.slane %v144, 4
    %v148 = vadd.f32 %v144, %v147
    %v149 = vrot.slane %v148, 2
    %v150 = vadd.f32 %v148, %v149
    %v151 = vrot.slane %v150, 1
    %v152 = vadd.f32 %v150, %v151
    %v153 = vmul.f32 %v144, %v144
    %v154 = vrot.slane %v153, 4
    %v155 = vadd.f32 %v153, %v154
    %v156 = vrot.slane %v155, 2
    %v157 = vadd.f32 %v155, %v156
    %v158 = vrot.slane %v157, 1
    %v159 = vadd.f32 %v157, %v158
    %v160 = vmul.f32 %v152, 0.125
    %v161 = vmul.f32 %v159, 0.125
    %v162 = vmul.f32 %v160, %v160
    %v163 = vsub.f32 %v161, %v162
    %v164 = vmax.f32 %v163, 0.0
    %v165 = vadd.f32 %v164, 1e-05
    %v166 = vrsqrt.pop %v165
    %v167 = vmul.f32 %v55, %v166
    %v168 = vmul.f32 %v160, %v167
    %v170 = vrot.slane %v168, 4
    %v172 = vsub.f32 %v56, %v170
    %v173 = vlaneseq
    %v174 = vshrl.u32 %v173, 7
    %v175 = vsub.s32 4, %v174
    %v176 = vrot.slane %v167, %v175
    %v177 = vmul.f32 %v144, %v176
    %v178 = vlaneseq
    %v179 = vshrl.u32 %v178, 7
    %v180 = vsub.s32 0, %v179
    %v181 = vrot.slane %v172, %v180
    %v182 = vadd.f32 %v177, %v181
    %v183 = vmax.f32 %v182, 0.0
    %s184 = scalar_lea.vmem [#allocation5], 128
    %v185 = vld [vmem:[%s184] sm:$0xff]
    %v186 = vld [vmem:[%s184 + $0x8] sm:$0xff]
    %v187 = vld [vmem:[%s184 + $0x10] sm:$0xff]
    %v188 = vld [vmem:[%s184 + $0x18] sm:$0xff]
    %v189 = vld [vmem:[%s184 + $0x20] sm:$0xff]
    %v190 = vld [vmem:[%s184 + $0x28] sm:$0xff]
    %v191 = vld [vmem:[%s184 + $0x30] sm:$0xff]
    %v192 = vld [vmem:[%s184 + $0x38] sm:$0xff]
    %v193 = vld [vmem:[%s184 + $0x40] sm:$0xff]
    %v194 = vld [vmem:[%s184 + $0x48] sm:$0xff]
    %v195 = vld [vmem:[%s184 + $0x50] sm:$0xff]
    %v196 = vld [vmem:[%s184 + $0x58] sm:$0xff]
    %v197 = vld [vmem:[%s184 + $0x60] sm:$0xff]
    %v198 = vld [vmem:[%s184 + $0x68] sm:$0xff]
    %v199 = vld [vmem:[%s184 + $0x70] sm:$0xff]
    %v200 = vld [vmem:[%s184 + $0x78] sm:$0xff]
    %v201 = vlaneseq
    %v202 = vshrl.u32 %v201, 7
    %v203 = vsub.s32 1, %v202
    %v204 = vrot.slane %v55, %v203
    %205 = vmatprep.subr.mxu0 0.0
    %206 = vmatpush1.msra.mxu0 %v185
    %207 = vmatprep.subr.mxu0 0.0
    %208 = vmatpush1.msra.mxu0 %v186
    %209 = vmatprep.subr.mxu0 0.0
    %210 = vmatpush1.msra.mxu0 %v187
    %211 = vmatprep.subr.mxu0 0.0
    %212 = vmatpush1.msra.mxu0 %v188
    %213 = vmatprep.subr.mxu0 0.0
    %214 = vmatpush1.msra.mxu0 %v189
    %215 = vmatprep.subr.mxu0 0.0
    %216 = vmatpush1.msra.mxu0 %v190
    %217 = vmatprep.subr.mxu0 0.0
    %218 = vmatpush1.msra.mxu0 %v191
    %219 = vmatprep.subr.mxu0 0.0
    %220 = vmatpush1.msra.mxu0 %v192
    %221 = vmatprep.subr.mxu0 0.0
    %222 = vmatpush1.msra.mxu0 %v193
    %223 = vmatprep.subr.mxu0 0.0
    %224 = vmatpush1.msra.mxu0 %v194
    %225 = vmatprep.subr.mxu0 0.0
    %226 = vmatpush1.msra.mxu0 %v195
    %227 = vmatprep.subr.mxu0 0.0
    %228 = vmatpush1.msra.mxu0 %v196
    %229 = vmatprep.subr.mxu0 0.0
    %230 = vmatpush1.msra.mxu0 %v197
    %231 = vmatprep.subr.mxu0 0.0
    %232 = vmatpush1.msra.mxu0 %v198
    %233 = vmatprep.subr.mxu0 0.0
    %234 = vmatpush1.msra.mxu0 %v199
    %235 = vmatprep.subr.mxu0 0.0
    %236 = vmatpush1.msra.mxu0 %v200
    %237 = vmatprep.subr.mxu0 0.0
    %238 = vmatpush1.msra.mxu0 0.0
    %239 = vmatprep.subr.mxu0 0.0
    %240 = vmatpush1.msra.mxu0 0.0
    %241 = vmatprep.subr.mxu0 0.0
    %242 = vmatpush1.msra.mxu0 0.0
    %243 = vmatprep.subr.mxu0 0.0
    %244 = vmatpush1.msra.mxu0 0.0
    %245 = vmatprep.subr.mxu0 0.0
    %246 = vmatpush1.msra.mxu0 0.0
    %247 = vmatprep.subr.mxu0 0.0
    %248 = vmatpush1.msra.mxu0 0.0
    %249 = vmatprep.subr.mxu0 0.0
    %250 = vmatpush1.msra.mxu0 0.0
    %251 = vmatprep.subr.mxu0 0.0
    %252 = vmatpush1.msra.mxu0 0.0
    %253 = vmatprep.subr.mxu0 0.0
    %254 = vmatpush1.msra.mxu0 0.0
    %255 = vmatprep.subr.mxu0 0.0
    %256 = vmatpush1.msra.mxu0 0.0
    %257 = vmatprep.subr.mxu0 0.0
    %258 = vmatpush1.msra.mxu0 0.0
    %259 = vmatprep.subr.mxu0 0.0
    %260 = vmatpush1.msra.mxu0 0.0
    %261 = vmatprep.subr.mxu0 0.0
    %262 = vmatpush1.msra.mxu0 0.0
    %263 = vmatprep.subr.mxu0 0.0
    %264 = vmatpush1.msra.mxu0 0.0
    %265 = vmatprep.subr.mxu0 0.0
    %266 = vmatpush1.msra.mxu0 0.0
    %267 = vmatprep.subr.mxu0 0.0
    %268 = vmatpush1.msra.mxu0 0.0
    %269 = vmatprep.mubr.f32.mxu0 0.0
    %270 = vmatmul.mubr.f32.gmra.mrb[0].mxu0 %v183
    %v271 = vpop.f32.mrb[0].mxu0
    %v272 = vadd.f32 %v204, %v271
    %v273 = vpop.f32.mrb[0].mxu0
    %274 = vdwg.mxu0
    %v275 = vrot.slane %v272, 4
    %v276 = vadd.f32 %v272, %v275
    %v277 = vrot.slane %v276, 2
    %v278 = vadd.f32 %v276, %v277
    %v279 = vrot.slane %v278, 1
    %v280 = vadd.f32 %v278, %v279
    %v281 = vmul.f32 %v272, %v272
    %v282 = vrot.slane %v281, 4
    %v283 = vadd.f32 %v281, %v282
    %v284 = vrot.slane %v283, 2
    %v285 = vadd.f32 %v283, %v284
    %v286 = vrot.slane %v285, 1
    %v287 = vadd.f32 %v285, %v286
    %v288 = vmul.f32 %v280, 0.125
    %v289 = vmul.f32 %v287, 0.125
    %v290 = vmul.f32 %v288, %v288
    %v291 = vsub.f32 %v289, %v290
    %v292 = vmax.f32 %v291, 0.0
    %v293 = vadd.f32 %v292, 1e-05
    %v294 = vrsqrt.pop %v293
    %v295 = vmul.f32 %v55, %v294
    %v296 = vmul.f32 %v288, %v295
    %v298 = vrot.slane %v296, 4
    %v300 = vsub.f32 %v56, %v298
    %v301 = vlaneseq
    %v302 = vshrl.u32 %v301, 7
    %v303 = vsub.s32 5, %v302
    %v304 = vrot.slane %v295, %v303
    %v305 = vmul.f32 %v272, %v304
    %v306 = vlaneseq
    %v307 = vshrl.u32 %v306, 7
    %v308 = vsub.s32 1, %v307
    %v309 = vrot.slane %v300, %v308
    %v310 = vadd.f32 %v305, %v309
    %v311 = vmax.f32 %v310, 0.0
    %s312 = scalar_lea.vmem [#allocation5], 256
    %v313 = vld [vmem:[%s312] sm:$0xff]
    %v314 = vld [vmem:[%s312 + $0x8] sm:$0xff]
    %v315 = vld [vmem:[%s312 + $0x10] sm:$0xff]
    %v316 = vld [vmem:[%s312 + $0x18] sm:$0xff]
    %v317 = vld [vmem:[%s312 + $0x20] sm:$0xff]
    %v318 = vld [vmem:[%s312 + $0x28] sm:$0xff]
    %v319 = vld [vmem:[%s312 + $0x30] sm:$0xff]
    %v320 = vld [vmem:[%s312 + $0x38] sm:$0xff]
    %v321 = vld [vmem:[%s312 + $0x40] sm:$0xff]
    %v322 = vld [vmem:[%s312 + $0x48] sm:$0xff]
    %v323 = vld [vmem:[%s312 + $0x50] sm:$0xff]
    %v324 = vld [vmem:[%s312 + $0x58] sm:$0xff]
    %v325 = vld [vmem:[%s312 + $0x60] sm:$0xff]
    %v326 = vld [vmem:[%s312 + $0x68] sm:$0xff]
    %v327 = vld [vmem:[%s312 + $0x70] sm:$0xff]
    %v328 = vld [vmem:[%s312 + $0x78] sm:$0xff]
    %v329 = vlaneseq
    %v330 = vshrl.u32 %v329, 7
    %v331 = vsub.s32 2, %v330
    %v332 = vrot.slane %v55, %v331
    %333 = vmatprep.subr.mxu0 0.0
    %334 = vmatpush1.msra.mxu0 %v313
    %335 = vmatprep.subr.mxu0 0.0
    %336 = vmatpush1.msra.mxu0 %v314
    %337 = vmatprep.subr.mxu0 0.0
    %338 = vmatpush1.msra.mxu0 %v315
    %339 = vmatprep.subr.mxu0 0.0
    %340 = vmatpush1.msra.mxu0 %v316
    %341 = vmatprep.subr.mxu0 0.0
    %342 = vmatpush1.msra.mxu0 %v317
    %343 = vmatprep.subr.mxu0 0.0
    %344 = vmatpush1.msra.mxu0 %v318
    %345 = vmatprep.subr.mxu0 0.0
    %346 = vmatpush1.msra.mxu0 %v319
    %347 = vmatprep.subr.mxu0 0.0
    %348 = vmatpush1.msra.mxu0 %v320
    %349 = vmatprep.subr.mxu0 0.0
    %350 = vmatpush1.msra.mxu0 %v321
    %351 = vmatprep.subr.mxu0 0.0
    %352 = vmatpush1.msra.mxu0 %v322
    %353 = vmatprep.subr.mxu0 0.0
    %354 = vmatpush1.msra.mxu0 %v323
    %355 = vmatprep.subr.mxu0 0.0
    %356 = vmatpush1.msra.mxu0 %v324
    %357 = vmatprep.subr.mxu0 0.0
    %358 = vmatpush1.msra.mxu0 %v325
    %359 = vmatprep.subr.mxu0 0.0
    %360 = vmatpush1.msra.mxu0 %v326
    %361 = vmatprep.subr.mxu0 0.0
    %362 = vmatpush1.msra.mxu0 %v327
    %363 = vmatprep.subr.mxu0 0.0
    %364 = vmatpush1.msra.mxu0 %v328
    %365 = vmatprep.subr.mxu0 0.0
    %366 = vmatpush1.msra.mxu0 0.0
    %367 = vmatprep.subr.mxu0 0.0
    %368 = vmatpush1.msra.mxu0 0.0
    %369 = vmatprep.subr.mxu0 0.0
    %370 = vmatpush1.msra.mxu0 0.0
    %371 = vmatprep.subr.mxu0 0.0
    %372 = vmatpush1.msra.mxu0 0.0
    %373 = vmatprep.subr.mxu0 0.0
    %374 = vmatpush1.msra.mxu0 0.0
    %375 = vmatprep.subr.mxu0 0.0
    %376 = vmatpush1.msra.mxu0 0.0
    %377 = vmatprep.subr.mxu0 0.0
    %378 = vmatpush1.msra.mxu0 0.0
    %379 = vmatprep.subr.mxu0 0.0
    %380 = vmatpush1.msra.mxu0 0.0
    %381 = vmatprep.subr.mxu0 0.0
    %382 = vmatpush1.msra.mxu0 0.0
    %383 = vmatprep.subr.mxu0 0.0
    %384 = vmatpush1.msra.mxu0 0.0
    %385 = vmatprep.subr.mxu0 0.0
    %386 = vmatpush1.msra.mxu0 0.0
    %387 = vmatprep.subr.mxu0 0.0
    %388 = vmatpush1.msra.mxu0 0.0
    %389 = vmatprep.subr.mxu0 0.0
    %390 = vmatpush1.msra.mxu0 0.0
    %391 = vmatprep.subr.mxu0 0.0
    %392 = vmatpush1.msra.mxu0 0.0
    %393 = vmatprep.subr.mxu0 0.0
    %394 = vmatpush1.msra.mxu0 0.0
    %395 = vmatprep.subr.mxu0 0.0
    %396 = vmatpush1.msra.mxu0 0.0
    %397 = vmatprep.mubr.f32.mxu0 0.0
    %398 = vmatmul.mubr.f32.gmra.mrb[0].mxu0 %v311
    %v399 = vpop.f32.mrb[0].mxu0
    %v400 = vadd.f32 %v332, %v399
    %v401 = vpop.f32.mrb[0].mxu0
    %402 = vdwg.mxu0
    %v403 = vrot.slane %v400, 4
    %v404 = vadd.f32 %v400, %v403
    %v405 = vrot.slane %v404, 2
    %v406 = vadd.f32 %v404, %v405
    %v407 = vrot.slane %v406, 1
    %v408 = vadd.f32 %v406, %v407
    %v409 = vmul.f32 %v400, %v400
    %v410 = vrot.slane %v409, 4
    %v411 = vadd.f32 %v409, %v410
    %v412 = vrot.slane %v411, 2
    %v413 = vadd.f32 %v411, %v412
    %v414 = vrot.slane %v413, 1
    %v415 = vadd.f32 %v413, %v414
    %v416 = vmul.f32 %v408, 0.125
    %v417 = vmul.f32 %v415, 0.125
    %v418 = vmul.f32 %v416, %v416
    %v419 = vsub.f32 %v417, %v418
    %v420 = vmax.f32 %v419, 0.0
    %v421 = vadd.f32 %v420, 1e-05
    %v422 = vrsqrt.pop %v421
    %v423 = vmul.f32 %v55, %v422
    %v424 = vmul.f32 %v416, %v423
    %v426 = vrot.slane %v424, 4
    %v428 = vsub.f32 %v56, %v426
    %v429 = vlaneseq
    %v430 = vshrl.u32 %v429, 7
    %v431 = vsub.s32 6, %v430
    %v432 = vrot.slane %v423, %v431
    %v433 = vmul.f32 %v400, %v432
    %v434 = vlaneseq
    %v435 = vshrl.u32 %v434, 7
    %v436 = vsub.s32 2, %v435
    %v437 = vrot.slane %v428, %v436
    %v438 = vadd.f32 %v433, %v437
    %v439 = vmax.f32 %v438, 0.0
    %s440 = scalar_lea.vmem [#allocation5], 384
    %v441 = vld [vmem:[%s440] sm:$0xff]
    %v442 = vld [vmem:[%s440 + $0x8] sm:$0xff]
    %v443 = vld [vmem:[%s440 + $0x10] sm:$0xff]
    %v444 = vld [vmem:[%s440 + $0x18] sm:$0xff]
    %v445 = vld [vmem:[%s440 + $0x20] sm:$0xff]
    %v446 = vld [vmem:[%s440 + $0x28] sm:$0xff]
    %v447 = vld [vmem:[%s440 + $0x30] sm:$0xff]
    %v448 = vld [vmem:[%s440 + $0x38] sm:$0xff]
    %v449 = vld [vmem:[%s440 + $0x40] sm:$0xff]
    %v450 = vld [vmem:[%s440 + $0x48] sm:$0xff]
    %v451 = vld [vmem:[%s440 + $0x50] sm:$0xff]
    %v452 = vld [vmem:[%s440 + $0x58] sm:$0xff]
    %v453 = vld [vmem:[%s440 + $0x60] sm:$0xff]
    %v454 = vld [vmem:[%s440 + $0x68] sm:$0xff]
    %v455 = vld [vmem:[%s440 + $0x70] sm:$0xff]
    %v456 = vld [vmem:[%s440 + $0x78] sm:$0xff]
    %v457 = vlaneseq
    %v458 = vshrl.u32 %v457, 7
    %v459 = vsub.s32 3, %v458
    %v460 = vrot.slane %v55, %v459
    %461 = vmatprep.subr.mxu0 0.0
    %462 = vmatpush1.msra.mxu0 %v441
    %463 = vmatprep.subr.mxu0 0.0
    %464 = vmatpush1.msra.mxu0 %v442
    %465 = vmatprep.subr.mxu0 0.0
    %466 = vmatpush1.msra.mxu0 %v443
    %467 = vmatprep.subr.mxu0 0.0
    %468 = vmatpush1.msra.mxu0 %v444
    %469 = vmatprep.subr.mxu0 0.0
    %470 = vmatpush1.msra.mxu0 %v445
    %471 = vmatprep.subr.mxu0 0.0
    %472 = vmatpush1.msra.mxu0 %v446
    %473 = vmatprep.subr.mxu0 0.0
    %474 = vmatpush1.msra.mxu0 %v447
    %475 = vmatprep.subr.mxu0 0.0
    %476 = vmatpush1.msra.mxu0 %v448
    %477 = vmatprep.subr.mxu0 0.0
    %478 = vmatpush1.msra.mxu0 %v449
    %479 = vmatprep.subr.mxu0 0.0
    %480 = vmatpush1.msra.mxu0 %v450
    %481 = vmatprep.subr.mxu0 0.0
    %482 = vmatpush1.msra.mxu0 %v451
    %483 = vmatprep.subr.mxu0 0.0
    %484 = vmatpush1.msra.mxu0 %v452
    %485 = vmatprep.subr.mxu0 0.0
    %486 = vmatpush1.msra.mxu0 %v453
    %487 = vmatprep.subr.mxu0 0.0
    %488 = vmatpush1.msra.mxu0 %v454
    %489 = vmatprep.subr.mxu0 0.0
    %490 = vmatpush1.msra.mxu0 %v455
    %491 = vmatprep.subr.mxu0 0.0
    %492 = vmatpush1.msra.mxu0 %v456
    %493 = vmatprep.subr.mxu0 0.0
    %494 = vmatpush1.msra.mxu0 0.0
    %495 = vmatprep.subr.mxu0 0.0
    %496 = vmatpush1.msra.mxu0 0.0
    %497 = vmatprep.subr.mxu0 0.0
    %498 = vmatpush1.msra.mxu0 0.0
    %499 = vmatprep.subr.mxu0 0.0
    %500 = vmatpush1.msra.mxu0 0.0
    %501 = vmatprep.subr.mxu0 0.0
    %502 = vmatpush1.msra.mxu0 0.0
    %503 = vmatprep.subr.mxu0 0.0
    %504 = vmatpush1.msra.mxu0 0.0
    %505 = vmatprep.subr.mxu0 0.0
    %506 = vmatpush1.msra.mxu0 0.0
    %507 = vmatprep.subr.mxu0 0.0
    %508 = vmatpush1.msra.mxu0 0.0
    %509 = vmatprep.subr.mxu0 0.0
    %510 = vmatpush1.msra.mxu0 0.0
    %511 = vmatprep.subr.mxu0 0.0
    %512 = vmatpush1.msra.mxu0 0.0
    %513 = vmatprep.subr.mxu0 0.0
    %514 = vmatpush1.msra.mxu0 0.0
    %515 = vmatprep.subr.mxu0 0.0
    %516 = vmatpush1.msra.mxu0 0.0
    %517 = vmatprep.subr.mxu0 0.0
    %518 = vmatpush1.msra.mxu0 0.0
    %519 = vmatprep.subr.mxu0 0.0
    %520 = vmatpush1.msra.mxu0 0.0
    %521 = vmatprep.subr.mxu0 0.0
    %522 = vmatpush1.msra.mxu0 0.0
    %523 = vmatprep.subr.mxu0 0.0
    %524 = vmatpush1.msra.mxu0 0.0
    %525 = vmatprep.mubr.f32.mxu0 0.0
    %526 = vmatmul.mubr.f32.gmra.mrb[0].mxu0 %v439
    %v527 = vpop.f32.mrb[0].mxu0
    %v528 = vadd.f32 %v460, %v527
    %v529 = vpop.f32.mrb[0].mxu0
    %530 = vdwg.mxu0
    %531 = vst [vmem:[#allocation8] sm:$0xff] %v528
    // Predicated region
    $region26: #{tpu_custom_call.1} parent=1 // pred_check
      _
    $region27: #{tpu_custom_call.1} parent=1 // pred_check_branch
      %533 = sbr.rel (0) target = $region29
    $region28: #{tpu_custom_call.1} parent=1 // pred_region
      %s535 = ssub.s32 128, 128
      %536 = vsyncadd [#allocation4], %s535
      %s538 = sshll.u32 [#allocation8], 4
      %s539 = int_to_ptr.vmem [resolvable:$true] %s538
      %541 = dma.vmem_to_hbm [thread:$0]  %s539, 128, %s3, [#allocation4]
    $region29: #{tpu_custom_call.1} parent=1 // pred_fallthru
      _
    // Predicated region
    $region30: #{tpu_custom_call.1} parent=1 // pred_check
      _
    $region31: #{tpu_custom_call.1} parent=1 // pred_check_branch
      %543 = sbr.rel (0) target = $region33
    $region32: #{tpu_custom_call.1} parent=1 // pred_region
      %544 = dma.done [#allocation4], 128
    $region33: #{tpu_custom_call.1} parent=1 // pred_fallthru
      _
    %545 = vsyncpa [#allocation3], 1
    %546 = vsyncpa [#allocation6], 1
    %547 = vsyncpa [#allocation4], 1

</llo_original>
